<compile_context>
chip_gen: v7x
topology: tpu7x:2x2x1
jax: 0.10.0
libtpu: 0.0.40
codegen_flags: <defaults>
</compile_context>

<pallas_src>
import jax
import jax.numpy as jnp
from jax.experimental import pallas as pl
from jax.experimental.pallas import tpu as pltpu
import numpy as np

L_PAD = 128  # lane-dense padded latent dim used for the encoder weight/bias


def _round_up(n, m):
    return ((n + m - 1) // m) * m


def _autoencoder_kernel(x_ref, we_ref, be_ref, wd_ref, bd_ref,
                        phase_ref, recon_ref):
    # x_ref:     [TM, D]        streaming input tile (ragged last tile masked)
    # we_ref:    [D, 128]       encoder weight (in->out, zero-padded lanes)
    # be_ref:    [1, 128]       encoder bias   (zero-padded lanes)
    # wd_ref:    [latent, D]    decoder weight (lane-dense)
    # bd_ref:    [1, D]         decoder bias
    # phase_ref: [TM, latent]   phase output
    # recon_ref: [TM, D]        reconstruction output
    x = x_ref[...].astype(jnp.float32)

    # Encoder: MXU matmul with N padded to 128 (full-lane result tiles).
    ph = jnp.dot(x, we_ref[...], preferred_element_type=jnp.float32)
    ph = ph + be_ref[...]

    latent = phase_ref.shape[-1]                 # static (2)
    phase_ref[...] = ph[:, :latent].astype(phase_ref.dtype)

    # Decoder: K = latent (=2) contraction -> VPU broadcast-FMAs, skip the MXU.
    wd = wd_ref[...]
    recon = ph[:, 0:1] * wd[0:1, :]
    for l in range(1, latent):                   # tiny static unroll
        recon = recon + ph[:, l:l + 1] * wd[l:l + 1, :]
    recon = recon + bd_ref[...]
    recon_ref[...] = recon.astype(recon_ref.dtype)


def _vmem_capacity_bytes():
    try:
        info = pltpu.get_tpu_info()
        cap = getattr(info, "vmem_capacity_bytes", None)
        if cap:
            return int(cap)
    except Exception:
        pass
    return 64 * 1024 * 1024          # conservative default (v7x-sized)


def _pick_tm(batch, d, latent, budget_bytes):
    """Largest batch tile whose per-step VMEM footprint fits the budget.

    Footprint estimate (f32): double-buffered x and recon tiles, ~3 in-kernel
    block temporaries over D columns (decoder FMA chain + casts), plus the
    double-buffered phase tile and the padded [*,128] encoder intermediate.
    Also caps the tile so the parallel batch axis has >=2 grid steps (megacore).
    """
    if batch <= 8:
        return batch                              # full-dim block (always legal)

    def step_bytes(t):
        return 4 * t * (7 * d + 2 * latent + 2 * L_PAD)

    cap = 2048
    cap = min(cap, _round_up(pl.cdiv(batch, 2), 8))   # >=2 grid steps
    tm = min(cap, _round_up(batch, 8))
    tm = _round_up(tm, 8)
    while tm > 8 and step_bytes(tm) > budget_bytes:
        tm = max(8, _round_up(tm // 2, 8))
    return tm


@jax.jit
def phase_autoencoder_forward(x, w_enc, b_enc, w_dec, b_dec):
    """
    x:      [B, D]  float32
    w_enc:  [2, D]   (nn.Linear(D, 2).weight  — [out, in])
    b_enc:  [2]
    w_dec:  [D, 2]   (nn.Linear(2, D).weight  — [out, in])
    b_dec:  [D]
    returns (phase_coords [B, 2], reconstructed [B, D])
    """
    B, D = x.shape
    latent = w_enc.shape[0]
    f32 = jnp.float32

    # Generation-aware VMEM budget (v5e/v6e: 128 MiB, v7x: 64 MiB).
    vmem_cap = _vmem_capacity_bytes()
    vmem_limit = min(int(vmem_cap * 0.78), 100 * 1024 * 1024)

    # Resident (VMEM-constant) weight/bias blocks, double-buffered by Pallas.
    resident = 2 * 4 * (D * L_PAD + L_PAD + latent * D + D)
    budget = max(4 << 20, vmem_limit - resident - (2 << 20))
    tm = _pick_tm(B, D, latent, budget)
    grid = (pl.cdiv(B, tm),)

    # Only the tiny weights/biases get padded / transposed (one-shot glue ops);
    # x streams straight from HBM and outputs are written at their true shape.
    we_p = jnp.zeros((D, L_PAD), f32).at[:, :latent].set(jnp.asarray(w_enc, f32).T)
    be_p = jnp.zeros((1, L_PAD), f32).at[0, :latent].set(jnp.asarray(b_enc, f32))
    wd_p = jnp.asarray(w_dec, f32).T.reshape(latent, D)   # lane-dense [2, D]
    bd_p = jnp.asarray(b_dec, f32).reshape(1, D)

    cost = pl.CostEstimate(
        flops=4 * B * D * latent,
        transcendentals=0,
        bytes_accessed=4 * (2 * B * D + B * latent
                            + D * L_PAD + L_PAD + latent * D + D),
    )

    # TODO(synk): for very large D (>~16K) add a D-blocking grid axis with an
    # encoder accumulator so the resident [D,128] weight doesn't squeeze tm.
    phase, recon = pl.pallas_call(
        _autoencoder_kernel,
        out_shape=(
            jax.ShapeDtypeStruct((B, latent), x.dtype),
            jax.ShapeDtypeStruct((B, D), x.dtype),
        ),
        grid=grid,
        in_specs=[
            pl.BlockSpec((tm, D), lambda i: (i, 0)),        # x tile (streams)
            pl.BlockSpec((D, L_PAD), lambda i: (0, 0)),     # enc weight (resident)
            pl.BlockSpec((1, L_PAD), lambda i: (0, 0)),     # enc bias   (resident)
            pl.BlockSpec((latent, D), lambda i: (0, 0)),    # dec weight (resident)
            pl.BlockSpec((1, D), lambda i: (0, 0)),         # dec bias   (resident)
        ],
        out_specs=(
            pl.BlockSpec((tm, latent), lambda i: (i, 0)),   # phase
            pl.BlockSpec((tm, D), lambda i: (i, 0)),        # recon
        ),
        compiler_params=pltpu.CompilerParams(
            dimension_semantics=("parallel",),              # megacore on v7x
            vmem_limit_bytes=vmem_limit,
        ),
        cost_estimate=cost,
    )(x, we_p, be_p, wd_p, bd_p)

    return phase, recon


if __name__ == "__main__":
    key = jax.random.PRNGKey(0)
    B, D, LATENT = 8, 32, 2

    k_x, k_we, k_be, k_wd, k_bd = jax.random.split(key, 5)
    x = jax.random.normal(k_x, (B, D), dtype=jnp.float32)

    # deterministic init mimicking nn.Linear's U(-1/sqrt(in), 1/sqrt(in))
    bound_e = 1.0 / np.sqrt(D)
    bound_d = 1.0 / np.sqrt(LATENT)
    w_enc = jax.random.uniform(k_we, (LATENT, D), jnp.float32, -bound_e, bound_e)
    b_enc = jax.random.uniform(k_be, (LATENT,), jnp.float32, -bound_e, bound_e)
    w_dec = jax.random.uniform(k_wd, (D, LATENT), jnp.float32, -bound_d, bound_d)
    b_dec = jax.random.uniform(k_bd, (D,), jnp.float32, -bound_d, bound_d)

    phase, recon = phase_autoencoder_forward(x, w_enc, b_enc, w_dec, b_dec)
    jax.block_until_ready((phase, recon))

    # numpy float64 reference (independent of XLA matmul precision defaults)
    xn = np.asarray(x, np.float64)
    wen, ben = np.asarray(w_enc, np.float64), np.asarray(b_enc, np.float64)
    wdn, bdn = np.asarray(w_dec, np.float64), np.asarray(b_dec, np.float64)
    phase_ref = xn @ wen.T + ben
    recon_ref = phase_ref @ wdn.T + bdn
    np.testing.assert_allclose(np.asarray(phase, np.float64), phase_ref,
                               rtol=1e-4, atol=1e-4)
    np.testing.assert_allclose(np.asarray(recon, np.float64), recon_ref,
                               rtol=1e-4, atol=1e-4)

    print("KERNEL_OK")
</pallas_src>

<mosaic_0001>
module attributes {stable_mosaic.version = 11 : i64} {
  func.func @_autoencoder_kernel(%arg0: i32, %arg1: memref<8x32xf32, #tpu.memory_space<vmem>>, %arg2: memref<32x128xf32, #tpu.memory_space<vmem>>, %arg3: memref<1x128xf32, #tpu.memory_space<vmem>>, %arg4: memref<2x32xf32, #tpu.memory_space<vmem>>, %arg5: memref<1x32xf32, #tpu.memory_space<vmem>>, %arg6: memref<8x2xf32, #tpu.memory_space<vmem>>, %arg7: memref<8x32xf32, #tpu.memory_space<vmem>>) attributes {dimension_semantics = [#tpu.dimension_semantics<parallel>], iteration_bounds = array<i64: 1>, scalar_prefetch = 0 : i64, scratch_operands = 0 : i64, tpu.core_type = #tpu.core_type<tc>, window_params = [{transform_indices = @transform_0, window_bounds = array<i64: 8, 32>}, {pipeline_mode = #tpu.pipeline_mode<synchronous>, transform_indices = @transform_1, window_bounds = array<i64: 32, 128>}, {pipeline_mode = #tpu.pipeline_mode<synchronous>, transform_indices = @transform_2, window_bounds = array<i64: 1, 128>}, {pipeline_mode = #tpu.pipeline_mode<synchronous>, transform_indices = @transform_3, window_bounds = array<i64: 2, 32>}, {pipeline_mode = #tpu.pipeline_mode<synchronous>, transform_indices = @transform_4, window_bounds = array<i64: 1, 32>}, {transform_indices = @transform_5, window_bounds = array<i64: 8, 2>}, {transform_indices = @transform_6, window_bounds = array<i64: 8, 32>}]} {
    %c0 = arith.constant 0 : index
    %c0_0 = arith.constant 0 : index
    %0 = vector.load %arg1[%c0, %c0_0] : memref<8x32xf32, #tpu.memory_space<vmem>>, vector<8x32xf32>
    %c0_1 = arith.constant 0 : index
    %c0_2 = arith.constant 0 : index
    %1 = vector.load %arg2[%c0_1, %c0_2] : memref<32x128xf32, #tpu.memory_space<vmem>>, vector<32x128xf32>
    %cst = arith.constant dense<0.000000e+00> : vector<8x128xf32>
    %2 = tpu.matmul %0, %1, %cst {dimension_numbers = #tpu.dot_dimension_numbers<[1], [0], [0], [1], [0, 0, 1, 1], [], []>} : vector<8x32xf32>, vector<32x128xf32>, vector<8x128xf32> -> vector<8x128xf32>
    %c0_3 = arith.constant 0 : index
    %c0_4 = arith.constant 0 : index
    %3 = vector.load %arg3[%c0_3, %c0_4] : memref<1x128xf32, #tpu.memory_space<vmem>>, vector<1x128xf32>
    %4 = vector.broadcast %3 : vector<1x128xf32> to vector<8x128xf32>
    %5 = arith.addf %2, %4 : vector<8x128xf32>
    %6 = vector.extract_strided_slice %5 {offsets = [0, 0], sizes = [8, 2], strides = [1, 1]} : vector<8x128xf32> to vector<8x2xf32>
    %c0_5 = arith.constant 0 : index
    %c0_6 = arith.constant 0 : index
    %7 = vector.load %arg6[%c0_5, %c0_6] : memref<8x2xf32, #tpu.memory_space<vmem>>, vector<8x2xf32>
    tpu.vector_store %arg6[%c0_5, %c0_6], %6 {strides = array<i32>} : memref<8x2xf32, #tpu.memory_space<vmem>>, vector<8x2xf32>,
    %c0_7 = arith.constant 0 : index
    %c0_8 = arith.constant 0 : index
    %8 = vector.load %arg4[%c0_7, %c0_8] : memref<2x32xf32, #tpu.memory_space<vmem>>, vector<2x32xf32>
    %9 = vector.extract_strided_slice %5 {offsets = [0, 0], sizes = [8, 1], strides = [1, 1]} : vector<8x128xf32> to vector<8x1xf32>
    %10 = vector.extract_strided_slice %8 {offsets = [0, 0], sizes = [1, 32], strides = [1, 1]} : vector<2x32xf32> to vector<1x32xf32>
    %11 = vector.broadcast %9 : vector<8x1xf32> to vector<8x32xf32>
    %12 = vector.broadcast %10 : vector<1x32xf32> to vector<8x32xf32>
    %13 = arith.mulf %11, %12 : vector<8x32xf32>
    %14 = vector.extract_strided_slice %5 {offsets = [0, 1], sizes = [8, 1], strides = [1, 1]} : vector<8x128xf32> to vector<8x1xf32>
    %15 = vector.extract_strided_slice %8 {offsets = [1, 0], sizes = [1, 32], strides = [1, 1]} : vector<2x32xf32> to vector<1x32xf32>
    %16 = vector.broadcast %14 : vector<8x1xf32> to vector<8x32xf32>
    %17 = vector.broadcast %15 : vector<1x32xf32> to vector<8x32xf32>
    %18 = arith.mulf %16, %17 : vector<8x32xf32>
    %19 = arith.addf %13, %18 : vector<8x32xf32>
    %c0_9 = arith.constant 0 : index
    %c0_10 = arith.constant 0 : index
    %20 = vector.load %arg5[%c0_9, %c0_10] : memref<1x32xf32, #tpu.memory_space<vmem>>, vector<1x32xf32>
    %21 = vector.broadcast %20 : vector<1x32xf32> to vector<8x32xf32>
    %22 = arith.addf %19, %21 : vector<8x32xf32>
    %c0_11 = arith.constant 0 : index
    %c0_12 = arith.constant 0 : index
    %23 = vector.load %arg7[%c0_11, %c0_12] : memref<8x32xf32, #tpu.memory_space<vmem>>, vector<8x32xf32>
    tpu.vector_store %arg7[%c0_11, %c0_12], %22 {strides = array<i32>} : memref<8x32xf32, #tpu.memory_space<vmem>>, vector<8x32xf32>,
    return
  }
  func.func @transform_0(%arg0: i32) -> (i32, i32) {
    %c0_i32 = arith.constant 0 : i32
    %c0_i32_0 = arith.constant 0 : i32
    return %arg0, %c0_i32 : i32, i32
  }
  func.func @transform_1(%arg0: i32) -> (i32, i32) {
    %c0_i32 = arith.constant 0 : i32
    %c0_i32_0 = arith.constant 0 : i32
    %c0_i32_1 = arith.constant 0 : i32
    return %c0_i32, %c0_i32_0 : i32, i32
  }
  func.func @transform_2(%arg0: i32) -> (i32, i32) {
    %c0_i32 = arith.constant 0 : i32
    %c0_i32_0 = arith.constant 0 : i32
    %c0_i32_1 = arith.constant 0 : i32
    return %c0_i32, %c0_i32_0 : i32, i32
  }
  func.func @transform_3(%arg0: i32) -> (i32, i32) {
    %c0_i32 = arith.constant 0 : i32
    %c0_i32_0 = arith.constant 0 : i32
    %c0_i32_1 = arith.constant 0 : i32
    return %c0_i32, %c0_i32_0 : i32, i32
  }
  func.func @transform_4(%arg0: i32) -> (i32, i32) {
    %c0_i32 = arith.constant 0 : i32
    %c0_i32_0 = arith.constant 0 : i32
    %c0_i32_1 = arith.constant 0 : i32
    return %c0_i32, %c0_i32_0 : i32, i32
  }
  func.func @transform_5(%arg0: i32) -> (i32, i32) {
    %c0_i32 = arith.constant 0 : i32
    %c0_i32_0 = arith.constant 0 : i32
    return %arg0, %c0_i32 : i32, i32
  }
  func.func @transform_6(%arg0: i32) -> (i32, i32) {
    %c0_i32 = arith.constant 0 : i32
    %c0_i32_0 = arith.constant 0 : i32
    return %arg0, %c0_i32 : i32, i32
  }
}

</mosaic_0001>

<llo_original>
// kernel: phase_autoencoder_forward.1
$region0: #{phase_autoencoder_forward.1}
  #allocation0 [shape = 'u32[]', space=smem, size = 0x4, offset = 0x4, fixed_abs, tag = 'smem constant byte address 0x4 - core index']
  #allocation1 [shape = 'u32[144,128]{1,0:T(1,128)}', space=vmem, size = 0x12000, scoped, tag = 'internal scratch']
  %s0 = inlined_call_operand.vmem [shape: f32[8,32], index: 0, kind: input, shape index: {}]
  %s1 = inlined_call_operand.vmem [shape: f32[32,128], index: 1, kind: input, shape index: {}]
  %s2 = inlined_call_operand.vmem [shape: f32[1,128], index: 2, kind: input, shape index: {}]
  %s3 = inlined_call_operand.vmem [shape: f32[2,32], index: 3, kind: input, shape index: {}]
  %s4 = inlined_call_operand.vmem [shape: f32[1,32], index: 4, kind: input, shape index: {}]
  %s5 = inlined_call_operand.vmem [shape: f32[8,2], index: 5, kind: output, shape index: {0}]
  %s6 = inlined_call_operand.hbm [shape: f32[8,32], index: 6, kind: output, shape index: {1}]
  %7 = xla_tuple %s5, %s6
  %s8 = sld [smem:[#allocation0]]
  $region38: #{phase_autoencoder_forward.1} parent=0
    _
  %s10 = ssub.s32 1, %s8
  %s11 = scalar_select 0, %s10, %s8
  $region1: #{phase_autoencoder_forward.1} parent=0
    #allocation2 [shape = 'u8[4096]{0}', space=vmem, size = 0x1000, scoped, tag = 'output window, operand 1, single buffered']
    #allocation3 [shape = 's32[1]{0}', space=sflag, size = 0x4, scoped, tag = 'scoped memory for phase_autoencoder_forward.1']
    %12 = vsyncpa [#allocation3], 0
    // Predicated region
    $region2: #{phase_autoencoder_forward.1} parent=1 // pred_check
      _
    $region3: #{phase_autoencoder_forward.1} parent=1 // pred_check_branch
      %14 = sbr.rel (0) target = $region5
    $region4: #{phase_autoencoder_forward.1} parent=1 // pred_region
      _
    $region5: #{phase_autoencoder_forward.1} parent=1 // pred_fallthru
      _
    // Predicated region
    $region6: #{phase_autoencoder_forward.1} parent=1 // pred_check
      _
    $region7: #{phase_autoencoder_forward.1} parent=1 // pred_check_branch
      %16 = sbr.rel (0) target = $region9
    $region8: #{phase_autoencoder_forward.1} parent=1 // pred_region
      _
    $region9: #{phase_autoencoder_forward.1} parent=1 // pred_fallthru
      _
    // Predicated region
    $region10: #{phase_autoencoder_forward.1} parent=1 // pred_check
      _
    $region11: #{phase_autoencoder_forward.1} parent=1 // pred_check_branch
      %18 = sbr.rel (0) target = $region13
    $region12: #{phase_autoencoder_forward.1} parent=1 // pred_region
      _
    $region13: #{phase_autoencoder_forward.1} parent=1 // pred_fallthru
      _
    // Predicated region
    $region14: #{phase_autoencoder_forward.1} parent=1 // pred_check
      _
    $region15: #{phase_autoencoder_forward.1} parent=1 // pred_check_branch
      %20 = sbr.rel (0) target = $region17
    $region16: #{phase_autoencoder_forward.1} parent=1 // pred_region
      _
    $region17: #{phase_autoencoder_forward.1} parent=1 // pred_fallthru
      _
    // Predicated region
    $region18: #{phase_autoencoder_forward.1} parent=1 // pred_check
      _
    $region19: #{phase_autoencoder_forward.1} parent=1 // pred_check_branch
      %22 = sbr.rel (0) target = $region21
    $region20: #{phase_autoencoder_forward.1} parent=1 // pred_region
      _
    $region21: #{phase_autoencoder_forward.1} parent=1 // pred_fallthru
      _
    %v23 = vld [vmem:[%s0] sm:$0xff]
    %v24 = vld [vmem:[%s1] sm:$0xff]
    %v25 = vld [vmem:[%s1 + $0x8] sm:$0xff]
    %v26 = vld [vmem:[%s1 + $0x10] sm:$0xff]
    %v27 = vld [vmem:[%s1 + $0x18] sm:$0xff]
    %v28 = vld [vmem:[%s2] sm:$0x1]
    %v30 = vlaneseq
    %v31 = vshrl.u32 %v30, 7
    %v32 = vsub.s32 0, %v31
    %v33 = vrot.slane %v28, %v32
    %vm35 = vcmask 261120
    %v37 = vsel %vm35, %v23, 0
    %39 = vmatprep.subr.mxu0 0.0
    %40 = vmatpush1.msra.mxu0 %v24
    %41 = vmatprep.subr.mxu0 0.0
    %42 = vmatpush1.msra.mxu0 %v25
    %43 = vmatprep.subr.mxu0 0.0
    %44 = vmatpush1.msra.mxu0 %v26
    %45 = vmatprep.subr.mxu0 0.0
    %46 = vmatpush1.msra.mxu0 %v27
    %47 = vmatprep.subr.mxu0 0.0
    %48 = vmatpush1.msra.mxu0 0.0
    %49 = vmatprep.subr.mxu0 0.0
    %50 = vmatpush1.msra.mxu0 0.0
    %51 = vmatprep.subr.mxu0 0.0
    %52 = vmatpush1.msra.mxu0 0.0
    %53 = vmatprep.subr.mxu0 0.0
    %54 = vmatpush1.msra.mxu0 0.0
    %55 = vmatprep.subr.mxu0 0.0
    %56 = vmatpush1.msra.mxu0 0.0
    %57 = vmatprep.subr.mxu0 0.0
    %58 = vmatpush1.msra.mxu0 0.0
    %59 = vmatprep.subr.mxu0 0.0
    %60 = vmatpush1.msra.mxu0 0.0
    %61 = vmatprep.subr.mxu0 0.0
    %62 = vmatpush1.msra.mxu0 0.0
    %63 = vmatprep.subr.mxu0 0.0
    %64 = vmatpush1.msra.mxu0 0.0
    %65 = vmatprep.subr.mxu0 0.0
    %66 = vmatpush1.msra.mxu0 0.0
    %67 = vmatprep.subr.mxu0 0.0
    %68 = vmatpush1.msra.mxu0 0.0
    %69 = vmatprep.subr.mxu0 0.0
    %70 = vmatpush1.msra.mxu0 0.0
    %71 = vmatprep.subr.mxu0 0.0
    %72 = vmatpush1.msra.mxu0 0.0
    %73 = vmatprep.subr.mxu0 0.0
    %74 = vmatpush1.msra.mxu0 0.0
    %75 = vmatprep.subr.mxu0 0.0
    %76 = vmatpush1.msra.mxu0 0.0
    %77 = vmatprep.subr.mxu0 0.0
    %78 = vmatpush1.msra.mxu0 0.0
    %79 = vmatprep.subr.mxu0 0.0
    %80 = vmatpush1.msra.mxu0 0.0
    %81 = vmatprep.subr.mxu0 0.0
    %82 = vmatpush1.msra.mxu0 0.0
    %83 = vmatprep.subr.mxu0 0.0
    %84 = vmatpush1.msra.mxu0 0.0
    %85 = vmatprep.subr.mxu0 0.0
    %86 = vmatpush1.msra.mxu0 0.0
    %87 = vmatprep.subr.mxu0 0.0
    %88 = vmatpush1.msra.mxu0 0.0
    %89 = vmatprep.subr.mxu0 0.0
    %90 = vmatpush1.msra.mxu0 0.0
    %91 = vmatprep.subr.mxu0 0.0
    %92 = vmatpush1.msra.mxu0 0.0
    %93 = vmatprep.subr.mxu0 0.0
    %94 = vmatpush1.msra.mxu0 0.0
    %95 = vmatprep.subr.mxu0 0.0
    %96 = vmatpush1.msra.mxu0 0.0
    %97 = vmatprep.subr.mxu0 0.0
    %98 = vmatpush1.msra.mxu0 0.0
    %99 = vmatprep.subr.mxu0 0.0
    %100 = vmatpush1.msra.mxu0 0.0
    %101 = vmatprep.subr.mxu0 0.0
    %102 = vmatpush1.msra.mxu0 0.0
    %103 = vmatprep.mubr.f32.mxu0 0.0
    %104 = vmatmul.mubr.f32.gmra.mrb[0].mxu0 %v37
    %v105 = vpop.f32.mrb[0].mxu0
    %v106 = vadd.f32 %v33, %v105
    %v107 = vpop.f32.mrb[0].mxu0
    %108 = vdwg.mxu0
    %vm109 = vcmask 15360
    %110 = vst.msk [vmem:[%s5] sm:$0xff] %vm109, %v106
    %v111 = vld [vmem:[%s3] sm:$0x3]
    %113 = vset.pattern.permute.xlu0 0
    %114 = vperm.xlu0 %113, %v106
    %v115 = vpop.permute.xlu0 %114
    %v117 = vlaneseq
    %v118 = vshrl.u32 %v117, 7
    %v119 = vsub.s32 0, %v118
    %v120 = vrot.slane %v111, %v119
    %v121 = vmul.f32 %v115, %v120
    %122 = vset.pattern.permute.xlu0 1
    %123 = vperm.xlu0 %122, %v106
    %v124 = vpop.permute.xlu0 %123
    %v126 = vlaneseq
    %v127 = vshrl.u32 %v126, 7
    %v128 = vsub.s32 1, %v127
    %v129 = vrot.slane %v111, %v128
    %v130 = vmul.f32 %v124, %v129
    %v131 = vadd.f32 %v121, %v130
    %v132 = vld [vmem:[%s4] sm:$0x1]
    %v134 = vlaneseq
    %v135 = vshrl.u32 %v134, 7
    %v136 = vsub.s32 0, %v135
    %v137 = vrot.slane %v132, %v136
    %v139 = vadd.f32 %v131, %v137
    %140 = vst.msk [vmem:[#allocation2] sm:$0xff] %vm35, %v139
    // Predicated region
    $region22: #{phase_autoencoder_forward.1} parent=1 // pred_check
      _
    $region23: #{phase_autoencoder_forward.1} parent=1 // pred_check_branch
      %142 = sbr.rel (0) target = $region25
    $region24: #{phase_autoencoder_forward.1} parent=1 // pred_region
      _
    $region25: #{phase_autoencoder_forward.1} parent=1 // pred_fallthru
      _
    // Predicated region
    $region26: #{phase_autoencoder_forward.1} parent=1 // pred_check
      _
    $region27: #{phase_autoencoder_forward.1} parent=1 // pred_check_branch
      %144 = sbr.rel (0) target = $region29
    $region28: #{phase_autoencoder_forward.1} parent=1 // pred_region
      %s146 = ssub.s32 128, 128
      %147 = vsyncadd [#allocation3], %s146
      %s149 = sshll.u32 [#allocation2], 4
      %s150 = int_to_ptr.vmem [resolvable:$true] %s149
      %152 = dma.vmem_to_hbm [thread:$0]  %s150, 128, %s6, [#allocation3]
    $region29: #{phase_autoencoder_forward.1} parent=1 // pred_fallthru
      _
    // Predicated region
    $region30: #{phase_autoencoder_forward.1} parent=1 // pred_check
      _
    $region31: #{phase_autoencoder_forward.1} parent=1 // pred_check_branch
      %154 = sbr.rel (0) target = $region33
    $region32: #{phase_autoencoder_forward.1} parent=1 // pred_region
      _
    $region33: #{phase_autoencoder_forward.1} parent=1 // pred_fallthru
      _
    // Predicated region
    $region34: #{phase_autoencoder_forward.1} parent=1 // pred_check
      _
    $region35: #{phase_autoencoder_forward.1} parent=1 // pred_check_branch
      %156 = sbr.rel (0) target = $region37
    $region36: #{phase_autoencoder_forward.1} parent=1 // pred_region
      %157 = dma.done [#allocation3], 128
    $region37: #{phase_autoencoder_forward.1} parent=1 // pred_fallthru
      _
    %158 = vsyncpa [#allocation3], 1

</llo_original>
